<compile_context>
chip_gen: v5e
topology: v5e:2x2
jax: 0.10.0
libtpu: 0.0.40
codegen_flags: <defaults>
</compile_context>

<pallas_src>
import functools

import numpy as np
import jax
import jax.numpy as jnp
from jax.experimental import pallas as pl
from jax.experimental.pallas import tpu as pltpu

FEATURE_MAP = 100   # self.output_feature_map in the PyTorch module
F_PAD = 128         # lane-aligned padded feature dim per conv width
OUT_PAD = 128       # lane-dense padded class dim of the kernel output block
NEG = -1.0e9        # pre-ReLU mask value baked into the bias map


def _auto_batch_block(B, L):
    """Batch tile so the fused matmul has enough rows to fill the MXU M dim."""
    bb = min(B, max(1, -(-256 // L)))   # >= 256 rows fills v6e/v7x MXU (v5e needs only 128)
    bb = min(bb, max(1, 8192 // L))     # keep f32 intermediates well inside 32 MiB scoped VMEM (v7x-safe)
    if bb < B and bb % 8:               # out block (bb, OUT_PAD) needs bb % 8 == 0 unless bb == B
        bb = min(B, ((bb + 7) // 8) * 8)
    return bb


def _make_kernel(bb, L, E, conv_width, f_pad, transpose_in):
    """Fused conv(all widths) -> bias+mask -> ReLU -> maxpool -> linear-diff -> softmax."""
    CW = conv_width
    K = CW * E
    N = CW * f_pad

    def kernel(x_ref, w_ref, bm_ref, dw_ref, db_ref, out_ref):
        x = x_ref[...]                                   # f32 batch tile
        if transpose_in:
            # NCL (PyTorch Conv1d) layout: swap (E, L) -> (L, E) on the tiny
            # in-VMEM tile (XLU work) instead of a separate XLA transpose op.
            x = jnp.swapaxes(x, 1, 2)                    # (bb, L, E)

        # im2col via circular sublane rolls: tap block dk holds x[:, t+dk, :].
        # Wrapped rows only feed conv positions that the -1e9 bias mask kills
        # before the ReLU/max-pool.
        parts = [x]
        for dk in range(1, CW):
            parts.append(pltpu.roll(x, shift=(L - dk) % L, axis=1))
        xc = parts[0] if CW == 1 else jnp.concatenate(parts, axis=-1)   # (bb, L, K)

        # Single cast at the MXU boundary; ONE matmul for every conv width:
        # (bb*L, K=CW*E) x (K, N=CW*f_pad), bf16 in / f32 accumulate.
        lhs = xc.reshape(bb * L, K).astype(w_ref.dtype)
        y = jnp.dot(lhs, w_ref[...], preferred_element_type=jnp.float32)

        # Bias + validity mask folded into one (L, N) input: valid slots hold
        # the conv bias, slots past each width's valid length (and padded
        # feature channels) hold -1e9, so ReLU zeroes them before the pool.
        y = y.reshape(bb, L, N) + bm_ref[...]
        y = jnp.maximum(y, 0.0)                          # ReLU (also applies the mask)
        pooled = jnp.max(y, axis=1)                      # (bb, N) full-length max-pool
        # TODO(synk): training-mode dropout (p=0.5, post-pool) omitted; eval mode = identity.

        # 2-class softmax as an exact sigmoid of the logit difference:
        #   diff = l0 - l1 = pooled . (w0 - w1) + (b0 - b1); p0 = sigmoid(diff).
        # Pure VPU/XLU/EUP work, rows sum to exactly 1.
        diff = jnp.sum(pooled * dw_ref[...], axis=1, keepdims=True) + db_ref[0, 0]
        p0 = 1.0 / (1.0 + jnp.exp(-diff))                # (bb, 1)
        p1 = 1.0 - p0
        lane = jax.lax.broadcasted_iota(jnp.int32, (bb, OUT_PAD), 1)
        probs = jnp.where(lane == 0, p0, jnp.where(lane == 1, p1, 0.0))
        out_ref[...] = probs.astype(out_ref.dtype)       # lane-dense (bb, 128) store

    return kernel


@functools.partial(jax.jit,
                   static_argnames=("conv_width", "f_pad", "batch_block", "input_layout"))
def cnn_drop_post_pool_forward(x, w_stack, bias_mask, dw, db, *, conv_width,
                               f_pad=F_PAD, batch_block=None, input_layout="BLE"):
    """Forward pass.

    x: (B, L, E) if input_layout=="BLE" (preferred -- no transpose anywhere), or
       (B, E, L) if input_layout=="NCL" (PyTorch Conv1d layout; swapped inside
       the kernel rather than as a separate XLA op).
    Returns (B, 2) softmax probabilities.
    """
    if input_layout == "BLE":
        B, L, E = x.shape
        transpose_in = False
    elif input_layout == "NCL":
        B, E, L = x.shape
        transpose_in = True
    else:
        raise ValueError(f"unknown input_layout: {input_layout!r}")

    CW = conv_width
    K, N = CW * E, CW * f_pad
    assert f_pad % 128 == 0
    assert w_stack.shape == (K, N)
    assert bias_mask.shape == (L, N)
    assert dw.shape == (1, N) and db.shape == (1, 1)

    bb = _auto_batch_block(B, L) if batch_block is None else max(1, min(batch_block, B))
    grid = (pl.cdiv(B, bb),)
    kernel = _make_kernel(bb, L, E, CW, f_pad, transpose_in)
    x_block = (bb, E, L) if transpose_in else (bb, L, E)

    out_pad = pl.pallas_call(
        kernel,
        out_shape=jax.ShapeDtypeStruct((B, OUT_PAD), jnp.float32),
        grid=grid,
        in_specs=[
            pl.BlockSpec(x_block, lambda b: (b, 0, 0)),       # per-step batch tile
            pl.BlockSpec((K, N), lambda b: (0, 0)),           # fused conv weights (bf16)
            pl.BlockSpec((L, N), lambda b: (0, 0)),           # conv bias with -1e9 validity mask
            pl.BlockSpec((1, N), lambda b: (0, 0)),           # linear weight diff (class0 - class1)
            pl.BlockSpec(memory_space=pltpu.MemorySpace.SMEM),  # linear bias diff (scalar)
        ],
        out_specs=pl.BlockSpec((bb, OUT_PAD), lambda b: (b, 0)),   # lane-dense output block
        compiler_params=pltpu.CompilerParams(
            dimension_semantics=("parallel",),                # batch axis shards across TCs (v7x)
            vmem_limit_bytes=32 * 1024 * 1024),
    )(x, w_stack, bias_mask, dw, db)
    return out_pad[:, :2]


def init_params(key, embedding_size, conv_width):
    """Raw parameters in PyTorch layout: conv_i.weight (F, E, k), conv_i.bias (F,),
    linear1.weight (2, CW*F), linear1.bias (2,)."""
    F = FEATURE_MAP
    keys = jax.random.split(key, 2 * conv_width + 2)
    conv_w, conv_b = [], []
    for i in range(conv_width):
        k = i + 1
        conv_w.append(jax.random.uniform(keys[2 * i], (F, embedding_size, k),
                                         minval=-0.05, maxval=0.05, dtype=jnp.float32))
        conv_b.append(jax.random.uniform(keys[2 * i + 1], (F,),
                                         minval=-0.05, maxval=0.05, dtype=jnp.float32))
    lin_w = jax.random.uniform(keys[-2], (2, conv_width * F),
                               minval=-0.05, maxval=0.05, dtype=jnp.float32)
    lin_b = jax.random.uniform(keys[-1], (2,),
                               minval=-0.05, maxval=0.05, dtype=jnp.float32)
    return conv_w, conv_b, lin_w, lin_b


def prepare_params(conv_weights, conv_biases, lin_w, lin_b, max_input_size, *,
                   f_pad=F_PAD, mxu_dtype=jnp.bfloat16):
    """One-time host-side prep into the fused, lane-aligned layout the kernel
    consumes.  Pass mxu_dtype=jnp.float32 for exact-f32 matmuls if bf16
    precision (~1e-3) is not acceptable."""
    CW = len(conv_weights)
    F, E = conv_weights[0].shape[0], conv_weights[0].shape[1]
    L = max_input_size
    K, N = CW * E, CW * f_pad

    w_stack = np.zeros((K, N), np.float32)
    bias_mask = np.full((L, N), NEG, np.float32)      # -1e9 everywhere; bias fills valid slots
    dw = np.zeros((1, N), np.float32)
    lin_w = np.asarray(lin_w, np.float32)
    for i in range(CW):
        k = i + 1
        w = np.asarray(conv_weights[i], np.float32)   # (F, E, k)
        for dk in range(k):
            w_stack[dk * E:(dk + 1) * E, i * f_pad:i * f_pad + F] = w[:, :, dk].T
        valid_t = L - k + 1                           # conv-k output length == maxpool-k window
        bias_mask[:valid_t, i * f_pad:i * f_pad + F] = \
            np.asarray(conv_biases[i], np.float32)[None, :]
        dw[0, i * f_pad:i * f_pad + F] = lin_w[0, i * F:(i + 1) * F] - lin_w[1, i * F:(i + 1) * F]
    lb = np.asarray(lin_b, np.float32)
    db = np.array([[lb[0] - lb[1]]], np.float32)
    return (jnp.asarray(w_stack, dtype=mxu_dtype),
            jnp.asarray(bias_mask),
            jnp.asarray(dw),
            jnp.asarray(db))


def reference_forward(x_ncl, conv_weights, conv_biases, lin_w, lin_b):
    """Pure-JAX (XLA) reference matching the PyTorch module in eval mode."""
    B, E, L = x_ncl.shape
    feats = []
    for i, (w, b) in enumerate(zip(conv_weights, conv_biases)):
        k = i + 1
        T = L - k + 1
        y = jnp.zeros((B, w.shape[0], T), jnp.float32)
        for dk in range(k):
            y = y + jnp.einsum("bet,fe->bft", x_ncl[:, :, dk:dk + T], w[:, :, dk])
        y = jnp.maximum(y + b[None, :, None], 0.0)
        feats.append(jnp.max(y, axis=-1))             # (B, F)
    feat = jnp.concatenate(feats, axis=1)             # (B, CW*F)
    logits = feat @ lin_w.T + lin_b[None, :]
    return jax.nn.softmax(logits, axis=1)


if __name__ == "__main__":
    # Shapes consistent with the module: conv_width=4, max_input_size (L)=16,
    # embedding_size=32, batch=2.
    B, E, L, CW = 2, 32, 16, 4

    key = jax.random.PRNGKey(0)
    kx, kp = jax.random.split(key)
    # Preferred (B, L, E) layout feeds the kernel with zero transposes anywhere.
    x_ble = jax.random.normal(kx, (B, L, E), dtype=jnp.float32)
    x_ncl = jnp.transpose(x_ble, (0, 2, 1))           # only for the pure-XLA reference check

    conv_w, conv_b, lin_w, lin_b = init_params(kp, E, CW)
    w_stack, bias_mask, dw, db = prepare_params(conv_w, conv_b, lin_w, lin_b, L)

    out = cnn_drop_post_pool_forward(x_ble, w_stack, bias_mask, dw, db,
                                     conv_width=CW, input_layout="BLE")
    out = jax.block_until_ready(out)

    ref = reference_forward(x_ncl, conv_w, conv_b, lin_w, lin_b)

    assert out.shape == (B, 2)
    assert jnp.allclose(jnp.sum(out, axis=1), 1.0, atol=1e-5)          # exact normalization
    assert jnp.allclose(out, ref, atol=1e-2), (np.asarray(out), np.asarray(ref))
    print("KERNEL_OK")
</pallas_src>

<mosaic_0001>
module attributes {stable_mosaic.version = 11 : i64} {
  func.func @kernel(%arg0: i32, %arg1: memref<2x16x32xf32, #tpu.memory_space<vmem>>, %arg2: memref<128x512xbf16, #tpu.memory_space<vmem>>, %arg3: memref<16x512xf32, #tpu.memory_space<vmem>>, %arg4: memref<1x512xf32, #tpu.memory_space<vmem>>, %arg5: memref<1x1xf32, #tpu.memory_space<smem>>, %arg6: memref<2x128xf32, #tpu.memory_space<vmem>>) attributes {dimension_semantics = [#tpu.dimension_semantics<parallel>], iteration_bounds = array<i64: 1>, scalar_prefetch = 0 : i64, scratch_operands = 0 : i64, tpu.core_type = #tpu.core_type<tc>, window_params = [{transform_indices = @transform_0, window_bounds = array<i64: 2, 16, 32>}, {pipeline_mode = #tpu.pipeline_mode<synchronous>, transform_indices = @transform_1, window_bounds = array<i64: 128, 512>}, {pipeline_mode = #tpu.pipeline_mode<synchronous>, transform_indices = @transform_2, window_bounds = array<i64: 16, 512>}, {pipeline_mode = #tpu.pipeline_mode<synchronous>, transform_indices = @transform_3, window_bounds = array<i64: 1, 512>}, {transform_indices = @transform_4, window_bounds = array<i64: 1, 1>}, {transform_indices = @transform_5, window_bounds = array<i64: 2, 128>}]} {
    %c0 = arith.constant 0 : index
    %c0_0 = arith.constant 0 : index
    %c0_1 = arith.constant 0 : index
    %0 = vector.load %arg1[%c0, %c0_0, %c0_1] : memref<2x16x32xf32, #tpu.memory_space<vmem>>, vector<2x16x32xf32>
    %c15_i32 = arith.constant 15 : i32
    %1 = tpu.dynamic_rotate %0 by %c15_i32 dim 1 : vector<2x16x32xf32>, i32 -> vector<2x16x32xf32>
    %c14_i32 = arith.constant 14 : i32
    %2 = tpu.dynamic_rotate %0 by %c14_i32 dim 1 : vector<2x16x32xf32>, i32 -> vector<2x16x32xf32>
    %c13_i32 = arith.constant 13 : i32
    %3 = tpu.dynamic_rotate %0 by %c13_i32 dim 1 : vector<2x16x32xf32>, i32 -> vector<2x16x32xf32>
    %4 = tpu.concatenate %0, %1, %2, %3 in 2 : vector<2x16x32xf32>, vector<2x16x32xf32>, vector<2x16x32xf32>, vector<2x16x32xf32> -> vector<2x16x128xf32>
    %5 = vector.shape_cast %4 : vector<2x16x128xf32> to vector<32x128xf32>
    %6 = arith.truncf %5 : vector<32x128xf32> to vector<32x128xbf16>
    %c0_2 = arith.constant 0 : index
    %c0_3 = arith.constant 0 : index
    %7 = vector.load %arg2[%c0_2, %c0_3] : memref<128x512xbf16, #tpu.memory_space<vmem>>, vector<128x512xbf16>
    %cst = arith.constant dense<0.000000e+00> : vector<32x512xf32>
    %8 = tpu.matmul %6, %7, %cst {dimension_numbers = #tpu.dot_dimension_numbers<[1], [0], [0], [1], [0, 0, 1, 1], [], []>} : vector<32x128xbf16>, vector<128x512xbf16>, vector<32x512xf32> -> vector<32x512xf32>
    %9 = vector.shape_cast %8 : vector<32x512xf32> to vector<2x16x512xf32>
    %c0_4 = arith.constant 0 : index
    %c0_5 = arith.constant 0 : index
    %10 = vector.load %arg3[%c0_4, %c0_5] : memref<16x512xf32, #tpu.memory_space<vmem>>, vector<16x512xf32>
    %11 = vector.shape_cast %10 : vector<16x512xf32> to vector<1x16x512xf32>
    %12 = vector.broadcast %11 : vector<1x16x512xf32> to vector<2x16x512xf32>
    %13 = arith.addf %9, %12 : vector<2x16x512xf32>
    %cst_6 = arith.constant 0.000000e+00 : f32
    %14 = vector.broadcast %cst_6 : f32 to vector<2x16x512xf32>
    %15 = arith.maximumf %13, %14 : vector<2x16x512xf32>
    %cst_7 = arith.constant dense<0xFF800000> : vector<2x512xf32>
    %16 = vector.multi_reduction <maximumf>, %15, %cst_7 [1] : vector<2x16x512xf32> to vector<2x512xf32>
    %c0_8 = arith.constant 0 : index
    %c0_9 = arith.constant 0 : index
    %17 = vector.load %arg4[%c0_8, %c0_9] : memref<1x512xf32, #tpu.memory_space<vmem>>, vector<1x512xf32>
    %18 = vector.broadcast %17 : vector<1x512xf32> to vector<2x512xf32>
    %19 = arith.mulf %16, %18 : vector<2x512xf32>
    %cst_10 = arith.constant dense<0.000000e+00> : vector<2xf32>
    %20 = vector.multi_reduction <add>, %19, %cst_10 [1] : vector<2x512xf32> to vector<2xf32>
    %21 = vector.shape_cast %20 : vector<2xf32> to vector<2x1xf32>
    %c0_11 = arith.constant 0 : index
    %c0_12 = arith.constant 0 : index
    %22 = memref.load %arg5[%c0_11, %c0_12] : memref<1x1xf32, #tpu.memory_space<smem>>
    %23 = vector.broadcast %22 : f32 to vector<2x1xf32>
    %24 = arith.addf %21, %23 : vector<2x1xf32>
    %cst_13 = arith.constant 0.000000e+00 : f32
    %25 = vector.broadcast %cst_13 : f32 to vector<2x1xf32>
    %26 = arith.subf %25, %24 : vector<2x1xf32>
    %27 = math.exp %26 : vector<2x1xf32>
    %cst_14 = arith.constant 1.000000e+00 : f32
    %28 = vector.broadcast %cst_14 : f32 to vector<2x1xf32>
    %29 = arith.addf %28, %27 : vector<2x1xf32>
    %cst_15 = arith.constant 1.000000e+00 : f32
    %30 = vector.broadcast %cst_15 : f32 to vector<2x1xf32>
    %31 = arith.divf %30, %29 : vector<2x1xf32>
    %cst_16 = arith.constant 1.000000e+00 : f32
    %32 = vector.broadcast %cst_16 : f32 to vector<2x1xf32>
    %33 = arith.subf %32, %31 : vector<2x1xf32>
    %34 = tpu.iota {dimensions = array<i32: 1>} : vector<2x128xi32>
    %c0_i32 = arith.constant 0 : i32
    %35 = vector.broadcast %c0_i32 : i32 to vector<2x128xi32>
    %36 = arith.cmpi eq, %34, %35 : vector<2x128xi32>
    %c1_i32 = arith.constant 1 : i32
    %37 = vector.broadcast %c1_i32 : i32 to vector<2x128xi32>
    %38 = arith.cmpi eq, %34, %37 : vector<2x128xi32>
    %cst_17 = arith.constant 0.000000e+00 : f32
    %39 = vector.shape_cast %33 : vector<2x1xf32> to vector<2x1xf32>
    %40 = vector.broadcast %39 : vector<2x1xf32> to vector<2x128xf32>
    %41 = vector.broadcast %cst_17 : f32 to vector<2x128xf32>
    %42 = arith.select %38, %40, %41 : vector<2x128xi1>, vector<2x128xf32>
    %43 = vector.shape_cast %31 : vector<2x1xf32> to vector<2x1xf32>
    %44 = vector.broadcast %43 : vector<2x1xf32> to vector<2x128xf32>
    %45 = arith.select %36, %44, %42 : vector<2x128xi1>, vector<2x128xf32>
    %c0_18 = arith.constant 0 : index
    %c0_19 = arith.constant 0 : index
    %46 = vector.load %arg6[%c0_18, %c0_19] : memref<2x128xf32, #tpu.memory_space<vmem>>, vector<2x128xf32>
    tpu.vector_store %arg6[%c0_18, %c0_19], %45 {strides = array<i32>} : memref<2x128xf32, #tpu.memory_space<vmem>>, vector<2x128xf32>,
    return
  }
  func.func @transform_0(%arg0: i32) -> (i32, i32, i32) {
    %c0_i32 = arith.constant 0 : i32
    %c0_i32_0 = arith.constant 0 : i32
    %c0_i32_1 = arith.constant 0 : i32
    return %arg0, %c0_i32, %c0_i32_0 : i32, i32, i32
  }
  func.func @transform_1(%arg0: i32) -> (i32, i32) {
    %c0_i32 = arith.constant 0 : i32
    %c0_i32_0 = arith.constant 0 : i32
    %c0_i32_1 = arith.constant 0 : i32
    return %c0_i32, %c0_i32_0 : i32, i32
  }
  func.func @transform_2(%arg0: i32) -> (i32, i32) {
    %c0_i32 = arith.constant 0 : i32
    %c0_i32_0 = arith.constant 0 : i32
    %c0_i32_1 = arith.constant 0 : i32
    return %c0_i32, %c0_i32_0 : i32, i32
  }
  func.func @transform_3(%arg0: i32) -> (i32, i32) {
    %c0_i32 = arith.constant 0 : i32
    %c0_i32_0 = arith.constant 0 : i32
    %c0_i32_1 = arith.constant 0 : i32
    return %c0_i32, %c0_i32_0 : i32, i32
  }
  func.func @transform_4(%arg0: i32) -> (i32, i32) {
    %c0_i32 = arith.constant 0 : i32
    %c0_i32_0 = arith.constant 0 : i32
    %c0_i32_1 = arith.constant 0 : i32
    return %c0_i32, %c0_i32_0 : i32, i32
  }
  func.func @transform_5(%arg0: i32) -> (i32, i32) {
    %c0_i32 = arith.constant 0 : i32
    %c0_i32_0 = arith.constant 0 : i32
    return %arg0, %c0_i32 : i32, i32
  }
}

</mosaic_0001>

<llo_original>
// kernel: cnn_drop_post_pool_forward.1
$region0: #{cnn_drop_post_pool_forward.1}
  #allocation0 [shape = 'u32[]', space=smem, size = 0x4, offset = 0x4, fixed_abs, tag = 'smem constant byte address 0x4 - core index']
  #allocation1 [shape = 'u32[72,128]{1,0:T(1,128)}', space=vmem, size = 0x9000, scoped, tag = 'internal scratch']
  #allocation2 [shape = 'f32[1,1]{1,0:T(1,128)S(6)}', space=smem, size = 0x200, scoped, tag = 'scoped memory for cnn_drop_post_pool_forward.1']
  %s0 = inlined_call_operand.hbm [shape: f32[2,16,32], index: 0, kind: input, shape index: {}]
  %s1 = inlined_call_operand.hbm [shape: bf16[128,512], index: 1, kind: input, shape index: {}]
  %s2 = inlined_call_operand.hbm [shape: f32[16,512], index: 2, kind: input, shape index: {}]
  %s3 = inlined_call_operand.vmem [shape: f32[1,512], index: 3, kind: input, shape index: {}]
  %s4 = inlined_call_operand.<no memory space> [shape: f32[1,1], index: 4, kind: input, shape index: {}]
  %s5 = inlined_call_operand.hbm [shape: f32[2,128], index: 5, kind: output, shape index: {}]
  %s6 = sld [smem:[#allocation0]]
  $region42: #{cnn_drop_post_pool_forward.1} parent=0
    _
  %s8 = ssub.s32 1, %s6
  %s9 = scalar_select 0, %s8, %s6
  %10 = sst [smem:[#allocation2]] %s4
  $region1: #{cnn_drop_post_pool_forward.1} parent=0
    #allocation3 [shape = 'u8[16384]{0}', space=vmem, size = 0x4000, scoped, tag = 'input window, operand 0, single buffered']
    #allocation4 [shape = 's32[1]{0}', space=sflag, size = 0x4, scoped, tag = 'scoped memory for cnn_drop_post_pool_forward.1']
    #allocation5 [shape = 's32[1]{0}', space=sflag, size = 0x4, scoped, tag = 'scoped memory for cnn_drop_post_pool_forward.1']
    #allocation6 [shape = 'u8[131072]{0}', space=vmem, size = 0x20000, scoped, tag = 'input window, operand 1, single buffered']
    #allocation7 [shape = 's32[1]{0}', space=sflag, size = 0x4, scoped, tag = 'scoped memory for cnn_drop_post_pool_forward.1']
    #allocation8 [shape = 'u8[32768]{0}', space=vmem, size = 0x8000, scoped, tag = 'input window, operand 2, single buffered']
    #allocation9 [shape = 'u8[1024]{0}', space=vmem, size = 0x400, scoped, tag = 'output window, operand 0, single buffered']
    %11 = vsyncpa [#allocation4], 0
    %12 = vsyncpa [#allocation7], 0
    %13 = vsyncpa [#allocation5], 0
    // Predicated region
    $region2: #{cnn_drop_post_pool_forward.1} parent=1 // pred_check
      _
    $region3: #{cnn_drop_post_pool_forward.1} parent=1 // pred_check_branch
      %15 = sbr.rel (0) target = $region5
    $region4: #{cnn_drop_post_pool_forward.1} parent=1 // pred_region
      %17 = vsyncadd [#allocation4], 0
      %s18 = sshll.u32 %s0, 4
      %s19 = int_to_ptr.hbm [resolvable:$true] %s18
      %s20 = sshll.u32 [#allocation3], 4
      %s21 = int_to_ptr.vmem [resolvable:$true] %s20
      %26 = dma.hbm_to_vmem [thread:$0]  %s19, 512, %s21, [#allocation4], 128, 128, 8
    $region5: #{cnn_drop_post_pool_forward.1} parent=1 // pred_fallthru
      _
    // Predicated region
    $region6: #{cnn_drop_post_pool_forward.1} parent=1 // pred_check
      _
    $region7: #{cnn_drop_post_pool_forward.1} parent=1 // pred_check_branch
      %28 = sbr.rel (0) target = $region9
    $region8: #{cnn_drop_post_pool_forward.1} parent=1 // pred_region
      %30 = vsyncadd [#allocation7], 0
      %s31 = sshll.u32 %s1, 4
      %s32 = int_to_ptr.hbm [resolvable:$true] %s31
      %s33 = sshll.u32 [#allocation6], 4
      %s34 = int_to_ptr.vmem [resolvable:$true] %s33
      %39 = dma.hbm_to_vmem [thread:$0]  %s32, 4096, %s34, [#allocation7], 256, 256, 16
    $region9: #{cnn_drop_post_pool_forward.1} parent=1 // pred_fallthru
      _
    // Predicated region
    $region10: #{cnn_drop_post_pool_forward.1} parent=1 // pred_check
      _
    $region11: #{cnn_drop_post_pool_forward.1} parent=1 // pred_check_branch
      %41 = sbr.rel (0) target = $region13
    $region12: #{cnn_drop_post_pool_forward.1} parent=1 // pred_region
      %43 = vsyncadd [#allocation7], 0
      %s44 = sshll.u32 %s2, 4
      %s45 = int_to_ptr.hbm [resolvable:$true] %s44
      %s46 = sshll.u32 [#allocation8], 4
      %s47 = int_to_ptr.vmem [resolvable:$true] %s46
      %52 = dma.hbm_to_vmem [thread:$0]  %s45, 1024, %s47, [#allocation7], 512, 512, 32
    $region13: #{cnn_drop_post_pool_forward.1} parent=1 // pred_fallthru
      _
    // Predicated region
    $region14: #{cnn_drop_post_pool_forward.1} parent=1 // pred_check
      _
    $region15: #{cnn_drop_post_pool_forward.1} parent=1 // pred_check_branch
      %54 = sbr.rel (0) target = $region17
    $region16: #{cnn_drop_post_pool_forward.1} parent=1 // pred_region
      _
    $region17: #{cnn_drop_post_pool_forward.1} parent=1 // pred_fallthru
      _
    // Predicated region
    $region18: #{cnn_drop_post_pool_forward.1} parent=1 // pred_check
      _
    $region19: #{cnn_drop_post_pool_forward.1} parent=1 // pred_check_branch
      %56 = sbr.rel (0) target = $region21
    $region20: #{cnn_drop_post_pool_forward.1} parent=1 // pred_region
      _
    $region21: #{cnn_drop_post_pool_forward.1} parent=1 // pred_fallthru
      _
    // Predicated region
    $region22: #{cnn_drop_post_pool_forward.1} parent=1 // pred_check
      _
    $region23: #{cnn_drop_post_pool_forward.1} parent=1 // pred_check_branch
      %58 = sbr.rel (0) target = $region25
    $region24: #{cnn_drop_post_pool_forward.1} parent=1 // pred_region
      %60 = dma.done [#allocation4], 512
    $region25: #{cnn_drop_post_pool_forward.1} parent=1 // pred_fallthru
      _
    // Predicated region
    $region26: #{cnn_drop_post_pool_forward.1} parent=1 // pred_check
      _
    $region27: #{cnn_drop_post_pool_forward.1} parent=1 // pred_check_branch
      %62 = sbr.rel (0) target = $region29
    $region28: #{cnn_drop_post_pool_forward.1} parent=1 // pred_region
      %64 = dma.done [#allocation7], 4096
    $region29: #{cnn_drop_post_pool_forward.1} parent=1 // pred_fallthru
      _
    // Predicated region
    $region30: #{cnn_drop_post_pool_forward.1} parent=1 // pred_check
      _
    $region31: #{cnn_drop_post_pool_forward.1} parent=1 // pred_check_branch
      %66 = sbr.rel (0) target = $region33
    $region32: #{cnn_drop_post_pool_forward.1} parent=1 // pred_region
      %68 = dma.done [#allocation7], 1024
    $region33: #{cnn_drop_post_pool_forward.1} parent=1 // pred_fallthru
      _
    %v69 = vld [vmem:[#allocation3] sm:$0xff]
    %v70 = vld [vmem:[#allocation3 + $0x8] sm:$0xff]
    %v71 = vld [vmem:[#allocation3 + $0x10] sm:$0xff]
    %v72 = vld [vmem:[#allocation3 + $0x18] sm:$0xff]
    %v73 = vrot.slane %v69, 1
    %v74 = vrot.slane %v71, 1
    %v75 = vrot.slane %v70, 1
    %v76 = vrot.slane %v72, 1
    %v77 = vlaneseq
    %v78 = vshrl.u32 %v77, 7
    %vm79 = vcmp.lt.s32.totalorder %v78, 7
    %v80 = vsel %vm79, %v73, %v75
    %v81 = vsel %vm79, %v74, %v76
    %v82 = vsel %vm79, %v75, %v73
    %v83 = vsel %vm79, %v76, %v74
    %v84 = vrot.slane %v69, 2
    %v85 = vrot.slane %v71, 2
    %v86 = vrot.slane %v70, 2
    %v87 = vrot.slane %v72, 2
    %vm88 = vcmp.lt.s32.totalorder %v78, 6
    %v89 = vsel %vm88, %v84, %v86
    %v90 = vsel %vm88, %v85, %v87
    %v91 = vsel %vm88, %v86, %v84
    %v92 = vsel %vm88, %v87, %v85
    %v93 = vrot.slane %v69, 3
    %v94 = vrot.slane %v71, 3
    %v95 = vrot.slane %v70, 3
    %v96 = vrot.slane %v72, 3
    %vm97 = vcmp.lt.s32.totalorder %v78, 5
    %v98 = vsel %vm97, %v93, %v95
    %v99 = vsel %vm97, %v94, %v96
    %v100 = vsel %vm97, %v95, %v93
    %v101 = vsel %vm97, %v96, %v94
    %106 = vrot.lane.b32.xlu0 %v80, 32
    %v107 = vpop.permute.xlu0 %106
    %108 = vrot.lane.b32.xlu0 %v82, 32
    %v109 = vpop.permute.xlu0 %108
    %110 = vrot.lane.b32.xlu0 %v81, 32
    %v111 = vpop.permute.xlu0 %110
    %112 = vrot.lane.b32.xlu0 %v83, 32
    %v113 = vpop.permute.xlu0 %112
    %122 = vrot.lane.b32.xlu0 %v89, 64
    %v123 = vpop.permute.xlu0 %122
    %124 = vrot.lane.b32.xlu0 %v91, 64
    %v125 = vpop.permute.xlu0 %124
    %126 = vrot.lane.b32.xlu0 %v90, 64
    %v127 = vpop.permute.xlu0 %126
    %128 = vrot.lane.b32.xlu0 %v92, 64
    %v129 = vpop.permute.xlu0 %128
    %138 = vrot.lane.b32.xlu0 %v98, 96
    %v139 = vpop.permute.xlu0 %138
    %140 = vrot.lane.b32.xlu0 %v100, 96
    %v141 = vpop.permute.xlu0 %140
    %142 = vrot.lane.b32.xlu0 %v99, 96
    %v143 = vpop.permute.xlu0 %142
    %144 = vrot.lane.b32.xlu0 %v101, 96
    %v145 = vpop.permute.xlu0 %144
    %vm150 = vcmask 261120
    %v151 = vsel %vm150, %v69, %v107
    %v152 = vsel %vm150, %v70, %v109
    %v153 = vsel %vm150, %v71, %v111
    %v154 = vsel %vm150, %v72, %v113
    %vm155 = vcmask 523264
    %v156 = vsel %vm155, %v151, %v123
    %v157 = vsel %vm155, %v152, %v125
    %v158 = vsel %vm155, %v153, %v127
    %v159 = vsel %vm155, %v154, %v129
    %vm160 = vcmask 785408
    %v161 = vsel %vm160, %v156, %v139
    %v162 = vsel %vm160, %v157, %v141
    %v163 = vsel %vm160, %v158, %v143
    %v164 = vsel %vm160, %v159, %v145
    %v165 = vpack.c.bf16 %v162, %v161
    %v166 = vpack.c.bf16 %v164, %v163
    %v167 = vld [vmem:[#allocation6] sm:$0xff]
    %v168 = vld [vmem:[#allocation6 + $0x8] sm:$0xff]
    %v169 = vld [vmem:[#allocation6 + $0x10] sm:$0xff]
    %v170 = vld [vmem:[#allocation6 + $0x18] sm:$0xff]
    %v171 = vld [vmem:[#allocation6 + $0x20] sm:$0xff]
    %v172 = vld [vmem:[#allocation6 + $0x28] sm:$0xff]
    %v173 = vld [vmem:[#allocation6 + $0x30] sm:$0xff]
    %v174 = vld [vmem:[#allocation6 + $0x38] sm:$0xff]
    %v175 = vld [vmem:[#allocation6 + $0x40] sm:$0xff]
    %v176 = vld [vmem:[#allocation6 + $0x48] sm:$0xff]
    %v177 = vld [vmem:[#allocation6 + $0x50] sm:$0xff]
    %v178 = vld [vmem:[#allocation6 + $0x58] sm:$0xff]
    %v179 = vld [vmem:[#allocation6 + $0x60] sm:$0xff]
    %v180 = vld [vmem:[#allocation6 + $0x68] sm:$0xff]
    %v181 = vld [vmem:[#allocation6 + $0x70] sm:$0xff]
    %v182 = vld [vmem:[#allocation6 + $0x78] sm:$0xff]
    %v183 = vld [vmem:[#allocation6 + $0x80] sm:$0xff]
    %v184 = vld [vmem:[#allocation6 + $0x88] sm:$0xff]
    %v185 = vld [vmem:[#allocation6 + $0x90] sm:$0xff]
    %v186 = vld [vmem:[#allocation6 + $0x98] sm:$0xff]
    %v187 = vld [vmem:[#allocation6 + $0xa0] sm:$0xff]
    %v188 = vld [vmem:[#allocation6 + $0xa8] sm:$0xff]
    %v189 = vld [vmem:[#allocation6 + $0xb0] sm:$0xff]
    %v190 = vld [vmem:[#allocation6 + $0xb8] sm:$0xff]
    %v191 = vld [vmem:[#allocation6 + $0xc0] sm:$0xff]
    %v192 = vld [vmem:[#allocation6 + $0xc8] sm:$0xff]
    %v193 = vld [vmem:[#allocation6 + $0xd0] sm:$0xff]
    %v194 = vld [vmem:[#allocation6 + $0xd8] sm:$0xff]
    %v195 = vld [vmem:[#allocation6 + $0xe0] sm:$0xff]
    %v196 = vld [vmem:[#allocation6 + $0xe8] sm:$0xff]
    %v197 = vld [vmem:[#allocation6 + $0xf0] sm:$0xff]
    %v198 = vld [vmem:[#allocation6 + $0xf8] sm:$0xff]
    %v231 = vunpack.c.l.b16 %v167
    %v232 = vunpack.c.h.b16 %v167
    %v233 = vunpack.c.l.b16 %v168
    %v234 = vunpack.c.h.b16 %v168
    %v235 = vunpack.c.l.b16 %v169
    %v236 = vunpack.c.h.b16 %v169
    %v237 = vunpack.c.l.b16 %v170
    %v238 = vunpack.c.h.b16 %v170
    %v239 = vunpack.c.l.b16 %v171
    %v240 = vunpack.c.h.b16 %v171
    %v241 = vunpack.c.l.b16 %v172
    %v242 = vunpack.c.h.b16 %v172
    %v243 = vunpack.c.l.b16 %v173
    %v244 = vunpack.c.h.b16 %v173
    %v245 = vunpack.c.l.b16 %v174
    %v246 = vunpack.c.h.b16 %v174
    %v247 = vunpack.c.l.b16 %v175
    %v248 = vunpack.c.h.b16 %v175
    %v249 = vunpack.c.l.b16 %v176
    %v250 = vunpack.c.h.b16 %v176
    %v251 = vunpack.c.l.b16 %v177
    %v252 = vunpack.c.h.b16 %v177
    %v253 = vunpack.c.l.b16 %v178
    %v254 = vunpack.c.h.b16 %v178
    %v255 = vunpack.c.l.b16 %v179
    %v256 = vunpack.c.h.b16 %v179
    %v257 = vunpack.c.l.b16 %v180
    %v258 = vunpack.c.h.b16 %v180
    %v259 = vunpack.c.l.b16 %v181
    %v260 = vunpack.c.h.b16 %v181
    %v261 = vunpack.c.l.b16 %v182
    %v262 = vunpack.c.h.b16 %v182
    %v263 = vunpack.c.l.b16 %v183
    %v264 = vunpack.c.h.b16 %v183
    %v265 = vunpack.c.l.b16 %v184
    %v266 = vunpack.c.h.b16 %v184
    %v267 = vunpack.c.l.b16 %v185
    %v268 = vunpack.c.h.b16 %v185
    %v269 = vunpack.c.l.b16 %v186
    %v270 = vunpack.c.h.b16 %v186
    %v271 = vunpack.c.l.b16 %v187
    %v272 = vunpack.c.h.b16 %v187
    %v273 = vunpack.c.l.b16 %v188
    %v274 = vunpack.c.h.b16 %v188
    %v275 = vunpack.c.l.b16 %v189
    %v276 = vunpack.c.h.b16 %v189
    %v277 = vunpack.c.l.b16 %v190
    %v278 = vunpack.c.h.b16 %v190
    %v279 = vunpack.c.l.b16 %v191
    %v280 = vunpack.c.h.b16 %v191
    %v281 = vunpack.c.l.b16 %v192
    %v282 = vunpack.c.h.b16 %v192
    %v283 = vunpack.c.l.b16 %v193
    %v284 = vunpack.c.h.b16 %v193
    %v285 = vunpack.c.l.b16 %v194
    %v286 = vunpack.c.h.b16 %v194
    %v287 = vunpack.c.l.b16 %v195
    %v288 = vunpack.c.h.b16 %v195
    %v289 = vunpack.c.l.b16 %v196
    %v290 = vunpack.c.h.b16 %v196
    %v291 = vunpack.c.l.b16 %v197
    %v292 = vunpack.c.h.b16 %v197
    %v293 = vunpack.c.l.b16 %v198
    %v294 = vunpack.c.h.b16 %v198
    %v295 = vpack.c.b16 %v235, %v231
    %v296 = vpack.c.b16 %v236, %v232
    %v297 = vpack.c.b16 %v237, %v233
    %v298 = vpack.c.b16 %v238, %v234
    %v299 = vpack.c.b16 %v243, %v239
    %v300 = vpack.c.b16 %v244, %v240
    %v301 = vpack.c.b16 %v245, %v241
    %v302 = vpack.c.b16 %v246, %v242
    %v303 = vpack.c.b16 %v251, %v247
    %v304 = vpack.c.b16 %v252, %v248
    %v305 = vpack.c.b16 %v253, %v249
    %v306 = vpack.c.b16 %v254, %v250
    %v307 = vpack.c.b16 %v259, %v255
    %v308 = vpack.c.b16 %v260, %v256
    %v309 = vpack.c.b16 %v261, %v257
    %v310 = vpack.c.b16 %v262, %v258
    %v311 = vpack.c.b16 %v267, %v263
    %v312 = vpack.c.b16 %v268, %v264
    %v313 = vpack.c.b16 %v269, %v265
    %v314 = vpack.c.b16 %v270, %v266
    %v315 = vpack.c.b16 %v275, %v271
    %v316 = vpack.c.b16 %v276, %v272
    %v317 = vpack.c.b16 %v277, %v273
    %v318 = vpack.c.b16 %v278, %v274
    %v319 = vpack.c.b16 %v283, %v279
    %v320 = vpack.c.b16 %v284, %v280
    %v321 = vpack.c.b16 %v285, %v281
    %v322 = vpack.c.b16 %v286, %v282
    %v323 = vpack.c.b16 %v291, %v287
    %v324 = vpack.c.b16 %v292, %v288
    %v325 = vpack.c.b16 %v293, %v289
    %v326 = vpack.c.b16 %v294, %v290
    %359 = vmatpush.bf16.msra.mxu0 %v323
    %360 = vmatpush.bf16.msra.mxu0 %v319
    %361 = vmatpush.bf16.msra.mxu0 %v315
    %362 = vmatpush.bf16.msra.mxu0 %v311
    %363 = vmatpush.bf16.msra.mxu0 %v307
    %364 = vmatpush.bf16.msra.mxu0 %v303
    %365 = vmatpush.bf16.msra.mxu0 %v299
    %366 = vmatpush.bf16.msra.mxu0 %v295
    %367 = vmatmul.bf16.gmra.mxu0 %v165
    %v368 = vpop.f32.mrf.mxu0
    %v369 = vadd.f32 0.0, %v368
    %v370 = vpop.f32.mrf.mxu0
    %v371 = vadd.f32 0.0, %v370
    %372 = vmatmul.bf16.gmra.mxu0 %v166
    %v373 = vpop.f32.mrf.mxu0
    %v374 = vadd.f32 0.0, %v373
    %v375 = vpop.f32.mrf.mxu0
    %v376 = vadd.f32 0.0, %v375
    %377 = vdwg.mxu0
    %378 = vmatpush.bf16.msra.mxu0 %v324
    %379 = vmatpush.bf16.msra.mxu0 %v320
    %380 = vmatpush.bf16.msra.mxu0 %v316
    %381 = vmatpush.bf16.msra.mxu0 %v312
    %382 = vmatpush.bf16.msra.mxu0 %v308
    %383 = vmatpush.bf16.msra.mxu0 %v304
    %384 = vmatpush.bf16.msra.mxu0 %v300
    %385 = vmatpush.bf16.msra.mxu0 %v296
    %386 = vmatmul.bf16.gmra.mxu0 %v165
    %v387 = vpop.f32.mrf.mxu0
    %v388 = vadd.f32 0.0, %v387
    %v389 = vpop.f32.mrf.mxu0
    %v390 = vadd.f32 0.0, %v389
    %391 = vmatmul.bf16.gmra.mxu0 %v166
    %v392 = vpop.f32.mrf.mxu0
    %v393 = vadd.f32 0.0, %v392
    %v394 = vpop.f32.mrf.mxu0
    %v395 = vadd.f32 0.0, %v394
    %396 = vdwg.mxu0
    %397 = vmatpush.bf16.msra.mxu0 %v325
    %398 = vmatpush.bf16.msra.mxu0 %v321
    %399 = vmatpush.bf16.msra.mxu0 %v317
    %400 = vmatpush.bf16.msra.mxu0 %v313
    %401 = vmatpush.bf16.msra.mxu0 %v309
    %402 = vmatpush.bf16.msra.mxu0 %v305
    %403 = vmatpush.bf16.msra.mxu0 %v301
    %404 = vmatpush.bf16.msra.mxu0 %v297
    %405 = vmatmul.bf16.gmra.mxu0 %v165
    %v406 = vpop.f32.mrf.mxu0
    %v407 = vadd.f32 0.0, %v406
    %v408 = vpop.f32.mrf.mxu0
    %v409 = vadd.f32 0.0, %v408
    %410 = vmatmul.bf16.gmra.mxu0 %v166
    %v411 = vpop.f32.mrf.mxu0
    %v412 = vadd.f32 0.0, %v411
    %v413 = vpop.f32.mrf.mxu0
    %v414 = vadd.f32 0.0, %v413
    %415 = vdwg.mxu0
    %416 = vmatpush.bf16.msra.mxu0 %v326
    %417 = vmatpush.bf16.msra.mxu0 %v322
    %418 = vmatpush.bf16.msra.mxu0 %v318
    %419 = vmatpush.bf16.msra.mxu0 %v314
    %420 = vmatpush.bf16.msra.mxu0 %v310
    %421 = vmatpush.bf16.msra.mxu0 %v306
    %422 = vmatpush.bf16.msra.mxu0 %v302
    %423 = vmatpush.bf16.msra.mxu0 %v298
    %424 = vmatmul.bf16.gmra.mxu0 %v165
    %v425 = vpop.f32.mrf.mxu0
    %v426 = vadd.f32 0.0, %v425
    %v427 = vpop.f32.mrf.mxu0
    %v428 = vadd.f32 0.0, %v427
    %429 = vmatmul.bf16.gmra.mxu0 %v166
    %v430 = vpop.f32.mrf.mxu0
    %v431 = vadd.f32 0.0, %v430
    %v432 = vpop.f32.mrf.mxu0
    %v433 = vadd.f32 0.0, %v432
    %434 = vdwg.mxu0
    %v435 = vld [vmem:[#allocation8] sm:$0xff]
    %v436 = vld [vmem:[#allocation8 + $0x8] sm:$0xff]
    %v437 = vld [vmem:[#allocation8 + $0x10] sm:$0xff]
    %v438 = vld [vmem:[#allocation8 + $0x18] sm:$0xff]
    %v439 = vld [vmem:[#allocation8 + $0x20] sm:$0xff]
    %v440 = vld [vmem:[#allocation8 + $0x28] sm:$0xff]
    %v441 = vld [vmem:[#allocation8 + $0x30] sm:$0xff]
    %v442 = vld [vmem:[#allocation8 + $0x38] sm:$0xff]
    %v443 = vadd.f32 %v369, %v435
    %v444 = vadd.f32 %v388, %v436
    %v445 = vadd.f32 %v407, %v437
    %v446 = vadd.f32 %v426, %v438
    %v447 = vadd.f32 %v371, %v439
    %v448 = vadd.f32 %v390, %v440
    %v449 = vadd.f32 %v409, %v441
    %v450 = vadd.f32 %v428, %v442
    %v451 = vadd.f32 %v374, %v435
    %v452 = vadd.f32 %v393, %v436
    %v453 = vadd.f32 %v412, %v437
    %v454 = vadd.f32 %v431, %v438
    %v455 = vadd.f32 %v376, %v439
    %v456 = vadd.f32 %v395, %v440
    %v457 = vadd.f32 %v414, %v441
    %v458 = vadd.f32 %v433, %v442
    %v459 = vmax.f32 %v443, 0.0
    %v460 = vmax.f32 %v444, 0.0
    %v461 = vmax.f32 %v445, 0.0
    %v462 = vmax.f32 %v446, 0.0
    %v463 = vmax.f32 %v447, 0.0
    %v464 = vmax.f32 %v448, 0.0
    %v465 = vmax.f32 %v449, 0.0
    %v466 = vmax.f32 %v450, 0.0
    %v467 = vmax.f32 %v451, 0.0
    %v468 = vmax.f32 %v452, 0.0
    %v469 = vmax.f32 %v453, 0.0
    %v470 = vmax.f32 %v454, 0.0
    %v471 = vmax.f32 %v455, 0.0
    %v472 = vmax.f32 %v456, 0.0
    %v473 = vmax.f32 %v457, 0.0
    %v474 = vmax.f32 %v458, 0.0
    %v475 = vmax.f32 %v459, %v463
    %v476 = vrot.slane %v475, 4
    %v477 = vmax.f32 %v475, %v476
    %v478 = vrot.slane %v477, 2
    %v479 = vmax.f32 %v477, %v478
    %v480 = vrot.slane %v479, 1
    %v481 = vmax.f32 %v479, %v480
    %v482 = vmax.f32 %v460, %v464
    %v483 = vrot.slane %v482, 4
    %v484 = vmax.f32 %v482, %v483
    %v485 = vrot.slane %v484, 2
    %v486 = vmax.f32 %v484, %v485
    %v487 = vrot.slane %v486, 1
    %v488 = vmax.f32 %v486, %v487
    %v489 = vmax.f32 %v461, %v465
    %v490 = vrot.slane %v489, 4
    %v491 = vmax.f32 %v489, %v490
    %v492 = vrot.slane %v491, 2
    %v493 = vmax.f32 %v491, %v492
    %v494 = vrot.slane %v493, 1
    %v495 = vmax.f32 %v493, %v494
    %v496 = vmax.f32 %v462, %v466
    %v497 = vrot.slane %v496, 4
    %v498 = vmax.f32 %v496, %v497
    %v499 = vrot.slane %v498, 2
    %v500 = vmax.f32 %v498, %v499
    %v501 = vrot.slane %v500, 1
    %v502 = vmax.f32 %v500, %v501
    %v503 = vmax.f32 %v467, %v471
    %v504 = vrot.slane %v503, 4
    %v505 = vmax.f32 %v503, %v504
    %v506 = vrot.slane %v505, 2
    %v507 = vmax.f32 %v505, %v506
    %v508 = vrot.slane %v507, 1
    %v509 = vmax.f32 %v507, %v508
    %v510 = vmax.f32 %v468, %v472
    %v511 = vrot.slane %v510, 4
    %v512 = vmax.f32 %v510, %v511
    %v513 = vrot.slane %v512, 2
    %v514 = vmax.f32 %v512, %v513
    %v515 = vrot.slane %v514, 1
    %v516 = vmax.f32 %v514, %v515
    %v517 = vmax.f32 %v469, %v473
    %v518 = vrot.slane %v517, 4
    %v519 = vmax.f32 %v517, %v518
    %v520 = vrot.slane %v519, 2
    %v521 = vmax.f32 %v519, %v520
    %v522 = vrot.slane %v521, 1
    %v523 = vmax.f32 %v521, %v522
    %v524 = vmax.f32 %v470, %v474
    %v525 = vrot.slane %v524, 4
    %v526 = vmax.f32 %v524, %v525
    %v527 = vrot.slane %v526, 2
    %v528 = vmax.f32 %v526, %v527
    %v529 = vrot.slane %v528, 1
    %v530 = vmax.f32 %v528, %v529
    %v531 = vld [vmem:[%s3] sm:$0xf]
    %v533 = vperm.slane %v531, 0
    %v534 = vperm.slane %v531, 1
    %v535 = vperm.slane %v531, 2
    %v536 = vperm.slane %v531, 3
    %v541 = vmul.f32 %v481, %v533
    %v542 = vmul.f32 %v488, %v534
    %v543 = vmul.f32 %v495, %v535
    %v544 = vmul.f32 %v502, %v536
    %v545 = vmul.f32 %v509, %v533
    %v546 = vmul.f32 %v516, %v534
    %v547 = vmul.f32 %v523, %v535
    %v548 = vmul.f32 %v530, %v536
    %v557 = vrot.slane %v545, 7
    %vm558 = vcmask 1041409
    %v559 = vsel %vm558, %v557, %v541
    %v560 = vrot.slane %v546, 7
    %v561 = vsel %vm558, %v560, %v542
    %v562 = vrot.slane %v547, 7
    %v563 = vsel %vm558, %v562, %v543
    %v564 = vrot.slane %v548, 7
    %v565 = vsel %vm558, %v564, %v544
    %vm570 = vcmask 1041408
    %v571 = vsel %vm570, %v559, 0.0
    %v572 = vsel %vm570, %v561, 0.0
    %v573 = vadd.f32 %v571, %v572
    %v574 = vsel %vm570, %v563, 0.0
    %v575 = vadd.f32 %v573, %v574
    %v576 = vsel %vm570, %v565, 0.0
    %v577 = vadd.f32 %v575, %v576
    %578 = vadd.xlane.f32.xlu0 %v577
    %v579 = vpop.xlane.xlu0 %578
    %s580 = sld [smem:[#allocation2]]
    %v581 = vstv %s580
    %v582 = vadd.f32 %v579, %v581
    %v583 = vsub.f32 0.0, %v582
    %v584 = vmul.f32 %v583, 1.442695
    %v585 = vpow.pop %v584
    %v586 = vadd.f32 %v585, 1.0
    %v587 = vrcp.pop %v586
    %v588 = vmul.f32 %v586, %v587
    %v589 = vsub.f32 1.0, %v588
    %v590 = vmul.f32 %v587, %v589
    %v591 = vadd.f32 %v587, %v590
    %vm592 = vweird.f32 %v586
    %vm593 = vweird.f32 %v587
    %vm594 = vmor %vm592, %vm593
    %v595 = vsel %vm594, %v587, %v591
    %v596 = vand.u32 2147483647, %v586
    %vm597 = vcmp.eq.f32.partialorder %v596, 8.507059e+37
    %v598 = vand.u32 %v586, 2147483648
    %v599 = vor.u32 1.1754944e-38, %v598
    %v600 = vsel %vm597, %v599, %v595
    %v601 = vmul.f32 1.0, %v600
    %v602 = vsub.f32 1.0, %v601
    %v603 = vlaneseq
    %v604 = vand.u32 %v603, 127
    %vm605 = vcmp.eq.s32.totalorder %v604, 0
    %vm606 = vcmp.eq.s32.totalorder %v604, 1
    %v607 = vsel %vm606, %v602, 0.0
    %v608 = vsel %vm605, %v601, %v607
    %609 = vst [vmem:[#allocation9] sm:$0x3] %v608
    // Predicated region
    $region34: #{cnn_drop_post_pool_forward.1} parent=1 // pred_check
      _
    $region35: #{cnn_drop_post_pool_forward.1} parent=1 // pred_check_branch
      %611 = sbr.rel (0) target = $region37
    $region36: #{cnn_drop_post_pool_forward.1} parent=1 // pred_region
      %613 = vsyncadd [#allocation5], 0
      %s615 = sshll.u32 [#allocation9], 4
      %s616 = int_to_ptr.vmem [resolvable:$true] %s615
      %s617 = sshll.u32 %s5, 4
      %s618 = int_to_ptr.hbm [resolvable:$true] %s617
      %620 = dma.vmem_to_hbm [thread:$0]  %s616, 32, %s618, [#allocation5]
    $region37: #{cnn_drop_post_pool_forward.1} parent=1 // pred_fallthru
      _
    // Predicated region
    $region38: #{cnn_drop_post_pool_forward.1} parent=1 // pred_check
      _
    $region39: #{cnn_drop_post_pool_forward.1} parent=1 // pred_check_branch
      %622 = sbr.rel (0) target = $region41
    $region40: #{cnn_drop_post_pool_forward.1} parent=1 // pred_region
      %624 = dma.done [#allocation5], 32
    $region41: #{cnn_drop_post_pool_forward.1} parent=1 // pred_fallthru
      _
    %625 = vsyncpa [#allocation4], 1
    %626 = vsyncpa [#allocation7], 1
    %627 = vsyncpa [#allocation5], 1

</llo_original>
